<compile_context>
chip_gen: v7x
topology: tpu7x:2x2x1
jax: 0.10.0
libtpu: 0.0.40
codegen_flags: <defaults>
</compile_context>

<pallas_src>
import jax
import jax.numpy as jnp
from jax.experimental import pallas as pl
from jax.experimental.pallas import tpu as pltpu

BN_EPS = 1e-5
LEAKY_SLOPE = 0.01
OUT_LANES = 128     # lane-dense output block; column 0 carries the Q value
PACK_WIDTH = 128    # packed parameter buffer lane width


def _leaky_relu(x):
    return jnp.where(x > 0, x, LEAKY_SLOPE * x)


def _round_up(x, m):
    return ((x + m - 1) // m) * m


# --------------------------------------------------------------------------- #
# Parameter packing (runs ONCE at init / param-update time, NOT per forward). #
# --------------------------------------------------------------------------- #
def pack_critic_params(params, state_size, action_size, fc1=256, fc2=128, fc3=128):
    """Fold BN affine into layer 1 and pack all params into one (rows, 128) f32 buffer."""
    W = PACK_WIDTH
    assert fc1 % W == 0, "fc1 must be a multiple of 128 for the packed layout"
    assert fc2 <= W and fc3 <= W, "fc2/fc3 must fit in 128 lanes"

    f32 = jnp.float32
    gamma = params["gamma"].reshape(1, state_size).astype(f32)
    beta = params["beta"].reshape(1, state_size).astype(f32)
    w1 = params["w1"].astype(f32)                              # (S, fc1)
    b1 = params["b1"].reshape(1, fc1).astype(f32)
    w1_eff = gamma.reshape(state_size, 1) * w1                 # diag(gamma) @ W1
    b1_eff = beta @ w1 + b1                                    # (1, fc1)

    s_pad = _round_up(state_size, 8)
    a_pad = _round_up(action_size, 8)
    n_chunks = fc1 // W                                        # 128-wide column chunks of fc1
    rows_w1 = n_chunks * s_pad
    rows_w2x = fc1
    rows_w2a = a_pad
    rows_w3 = _round_up(fc2, 8)
    bias_rows = _round_up(n_chunks + 4, 8)                     # b1 chunks, b2, b3, w4, b4

    off_w1 = 0
    off_w2x = off_w1 + rows_w1
    off_w2a = off_w2x + rows_w2x
    off_w3 = off_w2a + rows_w2a
    off_bias = off_w3 + rows_w3
    total = off_bias + bias_rows

    buf = jnp.zeros((total, W), f32)
    for c in range(n_chunks):                                  # w1 column chunks, stacked
        buf = buf.at[off_w1 + c * s_pad: off_w1 + c * s_pad + state_size, :].set(
            w1_eff[:, c * W:(c + 1) * W])
    buf = buf.at[off_w2x:off_w2x + fc1, :fc2].set(params["w2x"].astype(f32))
    buf = buf.at[off_w2a:off_w2a + action_size, :fc2].set(params["w2a"].astype(f32))
    buf = buf.at[off_w3:off_w3 + fc2, :fc3].set(params["w3"].astype(f32))
    # Coalesced bias block (single 8-sublane segment).
    for c in range(n_chunks):
        buf = buf.at[off_bias + c, :].set(b1_eff[0, c * W:(c + 1) * W])
    buf = buf.at[off_bias + n_chunks, :fc2].set(params["b2"].reshape(fc2).astype(f32))
    buf = buf.at[off_bias + n_chunks + 1, :fc3].set(params["b3"].reshape(fc3).astype(f32))
    buf = buf.at[off_bias + n_chunks + 2, :fc3].set(params["w4"].reshape(fc3).astype(f32))
    buf = buf.at[off_bias + n_chunks + 3, :].set(params["b4"].astype(f32).reshape(()))

    layout = dict(
        state_size=state_size, action_size=action_size, fc1=fc1, fc2=fc2, fc3=fc3,
        s_pad=s_pad, a_pad=a_pad, n_chunks=n_chunks, bias_rows=bias_rows,
        w1=off_w1, w2x=off_w2x, w2a=off_w2a, w3=off_w3, bias=off_bias,
        total_rows=total)
    return buf, layout


# --------------------------------------------------------------------------- #
# Kernel body (shared by the small-batch and the B-tiled kernels).            #
# --------------------------------------------------------------------------- #
def _critic_body(s_hat, a, p_ref, out_ref, lo, layer1_on_mxu):
    W = PACK_WIDTH
    S, A = lo["state_size"], lo["action_size"]
    fc2, fc3 = lo["fc2"], lo["fc3"]
    s_pad, n_chunks = lo["s_pad"], lo["n_chunks"]
    B = s_hat.shape[0]

    # Coalesced bias block (8-sublane aligned); value-slice individual rows.
    bias = p_ref[lo["bias"]:lo["bias"] + lo["bias_rows"], :]       # (bias_rows, 128)
    b2 = bias[n_chunks:n_chunks + 1, 0:fc2]
    b3 = bias[n_chunks + 1:n_chunks + 2, 0:fc3]
    w4 = bias[n_chunks + 2:n_chunks + 3, 0:fc3]
    b4 = bias[n_chunks + 3:n_chunks + 4, :]                        # b4 replicated across lanes

    # ---- layer-2 accumulator: bias + action branch (K=A tiny -> VPU broadcast-FMAs).
    acc2 = jnp.broadcast_to(b2, (B, fc2))
    w2a = p_ref[lo["w2a"]:lo["w2a"] + lo["a_pad"], 0:fc2]          # (a_pad, fc2)
    for j in range(A):
        acc2 = acc2 + a[:, j:j + 1] * w2a[j:j + 1, :]

    # ---- layer 1 (+ its layer-2 contribution), per 128-lane column chunk of fc1.
    for c in range(n_chunks):
        w1c = p_ref[lo["w1"] + c * s_pad:lo["w1"] + c * s_pad + S, :]   # (S, 128)
        b1c = bias[c:c + 1, :]                                          # (1, 128)
        if layer1_on_mxu:
            xc = jnp.dot(s_hat, w1c, preferred_element_type=jnp.float32) + b1c
        else:
            # K = state_size (16): keep it off the heavily K-padded MXU.
            xc = jnp.broadcast_to(b1c, (B, W))
            for i in range(S):
                xc = xc + s_hat[:, i:i + 1] * w1c[i:i + 1, :]
        xc = _leaky_relu(xc)                                            # (B, 128)
        w2xc = p_ref[lo["w2x"] + c * W:lo["w2x"] + (c + 1) * W, 0:fc2]  # (128, fc2)
        acc2 = acc2 + jnp.dot(xc, w2xc, preferred_element_type=jnp.float32)

    x = _leaky_relu(acc2)                                               # (B, fc2)

    # ---- layer 3 (MXU).
    w3 = p_ref[lo["w3"]:lo["w3"] + fc2, 0:fc3]
    x = _leaky_relu(jnp.dot(x, w3, preferred_element_type=jnp.float32) + b3)

    # ---- layer 4 (N=1): VPU multiply + lane reduce; lane-dense replicated store.
    q = jnp.sum(x * w4, axis=-1, keepdims=True)                         # (B, 1)
    out_ref[...] = jnp.broadcast_to(q, out_ref.shape) + b4


def _make_small_kernel(lo):
    """Single-block kernel: BN batch stats computed in-kernel (latency-bound path)."""
    def kernel(state_ref, action_ref, p_ref, out_ref):
        s = state_ref[...].astype(jnp.float32)                  # (B, S)
        mean = jnp.mean(s, axis=0, keepdims=True)
        diff = s - mean
        var = jnp.mean(diff * diff, axis=0, keepdims=True)      # biased batch variance
        s_hat = diff * jax.lax.rsqrt(var + BN_EPS)
        a = action_ref[...].astype(jnp.float32)
        _critic_body(s_hat, a, p_ref, out_ref, lo, layer1_on_mxu=False)
    return kernel


def _make_tiled_kernel(lo):
    """B-tiled kernel: full-batch BN stats passed in (correct under tiling)."""
    def kernel(stats_ref, state_ref, action_ref, p_ref, out_ref):
        mean = stats_ref[0:1, :]
        inv_std = stats_ref[1:2, :]
        s_hat = (state_ref[...].astype(jnp.float32) - mean) * inv_std
        a = action_ref[...].astype(jnp.float32)
        _critic_body(s_hat, a, p_ref, out_ref, lo, layer1_on_mxu=True)
    return kernel


# --------------------------------------------------------------------------- #
# Forward wrapper (jitted once per shape; packing is NOT done here).          #
# --------------------------------------------------------------------------- #
def make_critic_forward(layout, *, block_rows=256):
    lo = dict(layout)
    S, A = lo["state_size"], lo["action_size"]
    fc1, fc2, fc3 = lo["fc1"], lo["fc2"], lo["fc3"]
    small_kernel = _make_small_kernel(lo)
    tiled_kernel = _make_tiled_kernel(lo)

    def forward(state, action, packed):
        B = state.shape[0]
        flops = 2 * B * (S * fc1 + fc1 * fc2 + A * fc2 + fc2 * fc3 + fc3)
        nbytes = 4 * (int(packed.size) + B * (S + A + OUT_LANES) + 2 * S)
        cost = pl.CostEstimate(flops=int(flops), transcendentals=int(S),
                               bytes_accessed=int(nbytes))

        if B <= block_rows:
            # Small / latency-bound batch: one block, BN stats in-kernel.
            out = pl.pallas_call(
                small_kernel,
                out_shape=jax.ShapeDtypeStruct((B, OUT_LANES), jnp.float32),
                in_specs=[pl.BlockSpec(memory_space=pltpu.MemorySpace.VMEM)] * 3,
                out_specs=pl.BlockSpec(memory_space=pltpu.MemorySpace.VMEM),
                cost_estimate=cost,
            )(state, action, packed)
        else:
            # Training-size batch: full-batch BN stats first, then tile B and mark
            # the grid axis "parallel" (v7x 2-TC sharding / megacore).
            s32 = state.astype(jnp.float32)
            mean = jnp.mean(s32, axis=0, keepdims=True)
            var = jnp.mean((s32 - mean) ** 2, axis=0, keepdims=True)
            stats = jnp.concatenate([mean, jax.lax.rsqrt(var + BN_EPS)], axis=0)  # (2, S)
            tb = block_rows
            nb = pl.cdiv(B, tb)
            out = pl.pallas_call(
                tiled_kernel,
                out_shape=jax.ShapeDtypeStruct((B, OUT_LANES), jnp.float32),
                grid=(nb,),
                in_specs=[
                    pl.BlockSpec((2, S), lambda i: (0, 0)),
                    pl.BlockSpec((tb, S), lambda i: (i, 0)),
                    pl.BlockSpec((tb, A), lambda i: (i, 0)),
                    pl.BlockSpec((lo["total_rows"], PACK_WIDTH), lambda i: (0, 0)),
                ],
                out_specs=pl.BlockSpec((tb, OUT_LANES), lambda i: (i, 0)),
                compiler_params=pltpu.CompilerParams(
                    dimension_semantics=("parallel",)),
                cost_estimate=cost,
            )(stats, state, action, packed)
        # Consume lane 0 inside the same jit (fuses; no standalone dispatch).
        return out[:, :1]

    return jax.jit(forward)


# --------------------------------------------------------------------------- #
# Deterministic parameter init mirroring the PyTorch module's __init__.       #
# --------------------------------------------------------------------------- #
def init_critic_params(key, state_size, action_size, fc1=256, fc2=128, fc3=128):
    ks = jax.random.split(key, 10)

    def kaiming_normal(k, fan_in, fan_out):
        std = jnp.sqrt(2.0 / fan_in)
        return std * jax.random.normal(k, (fan_in, fan_out), jnp.float32)

    def torch_linear_default(k, fan_in, shape):
        bound = 1.0 / jnp.sqrt(fan_in)
        return jax.random.uniform(k, shape, jnp.float32, -bound, bound)

    in2 = fc1 + action_size
    w2_full = kaiming_normal(ks[2], in2, fc2)
    params = {
        "gamma": jnp.ones((1, state_size), jnp.float32),
        "beta": jnp.zeros((1, state_size), jnp.float32),
        "w1": kaiming_normal(ks[0], state_size, fc1),
        "b1": torch_linear_default(ks[1], state_size, (1, fc1)),
        "w2x": w2_full[:fc1, :],
        "w2a": w2_full[fc1:, :],
        "b2": torch_linear_default(ks[3], in2, (1, fc2)),
        "w3": jax.random.uniform(ks[4], (fc2, fc3), jnp.float32, -0.003, 0.003),
        "b3": torch_linear_default(ks[5], fc2, (1, fc3)),
        "w4": torch_linear_default(ks[6], fc3, (fc3, 1)),
        "b4": torch_linear_default(ks[7], fc3, (1, 1)),
    }
    return params


if __name__ == "__main__":
    key = jax.random.PRNGKey(0)
    k_state, k_action, k_params, k_state2, k_action2 = jax.random.split(key, 5)

    STATE, ACTION = 16, 4
    FC1, FC2, FC3 = 256, 128, 128

    params = init_critic_params(k_params, STATE, ACTION, FC1, FC2, FC3)
    # Pack ONCE at init (not per forward call).
    packed, layout = pack_critic_params(params, STATE, ACTION, FC1, FC2, FC3)
    critic = make_critic_forward(layout, block_rows=256)

    def reference(state, action):
        # Pure-JAX reference of the original (unfused) module math.
        mean = jnp.mean(state, axis=0, keepdims=True)
        var = jnp.mean((state - mean) ** 2, axis=0, keepdims=True)
        s_bn = (state - mean) / jnp.sqrt(var + BN_EPS) * params["gamma"] + params["beta"]
        lrelu = lambda x: jnp.where(x > 0, x, LEAKY_SLOPE * x)
        x = lrelu(s_bn @ params["w1"] + params["b1"])
        x = lrelu(jnp.concatenate([x, action], axis=1) @ jnp.concatenate(
            [params["w2x"], params["w2a"]], axis=0) + params["b2"])
        x = lrelu(x @ params["w3"] + params["b3"])
        return x @ params["w4"] + params["b4"]

    # --- Small batch (single block, latency-bound path, BN stats in-kernel).
    B = 8
    state = jax.random.normal(k_state, (B, STATE), jnp.float32)
    action = jax.random.normal(k_action, (B, ACTION), jnp.float32)
    q = critic(state, action, packed)
    jax.block_until_ready(q)
    assert q.shape == (B, 1) and q.dtype == jnp.float32
    assert jnp.allclose(q, reference(state, action), atol=1e-4, rtol=1e-4)

    # --- Training-size batch (grid over B, "parallel" axis, full-batch BN stats).
    B2 = 512
    state2 = jax.random.normal(k_state2, (B2, STATE), jnp.float32)
    action2 = jax.random.normal(k_action2, (B2, ACTION), jnp.float32)
    q2 = critic(state2, action2, packed)
    jax.block_until_ready(q2)
    assert q2.shape == (B2, 1) and q2.dtype == jnp.float32
    assert jnp.allclose(q2, reference(state2, action2), atol=1e-4, rtol=1e-4)

    print("KERNEL_OK")
</pallas_src>

<mosaic_0001>
module attributes {stable_mosaic.version = 11 : i64} {
  func.func @kernel(%arg0: memref<8x16xf32, #tpu.memory_space<vmem>>, %arg1: memref<8x4xf32, #tpu.memory_space<vmem>>, %arg2: memref<432x128xf32, #tpu.memory_space<vmem>>, %arg3: memref<8x128xf32, #tpu.memory_space<vmem>>) attributes {dimension_semantics = [], scalar_prefetch = 0 : i64, scratch_operands = 0 : i64, tpu.core_type = #tpu.core_type<tc>} {
    %c0 = arith.constant 0 : index
    %c0_0 = arith.constant 0 : index
    %0 = vector.load %arg0[%c0, %c0_0] : memref<8x16xf32, #tpu.memory_space<vmem>>, vector<8x16xf32>
    %cst = arith.constant dense<0.000000e+00> : vector<16xf32>
    %1 = vector.multi_reduction <add>, %0, %cst [0] : vector<8x16xf32> to vector<16xf32>
    %2 = vector.shape_cast %1 : vector<16xf32> to vector<1x16xf32>
    %cst_1 = arith.constant 8.000000e+00 : f32
    %3 = vector.broadcast %cst_1 : f32 to vector<1x16xf32>
    %4 = arith.divf %2, %3 : vector<1x16xf32>
    %5 = vector.broadcast %4 : vector<1x16xf32> to vector<8x16xf32>
    %6 = arith.subf %0, %5 : vector<8x16xf32>
    %7 = arith.mulf %6, %6 : vector<8x16xf32>
    %cst_2 = arith.constant dense<0.000000e+00> : vector<16xf32>
    %8 = vector.multi_reduction <add>, %7, %cst_2 [0] : vector<8x16xf32> to vector<16xf32>
    %9 = vector.shape_cast %8 : vector<16xf32> to vector<1x16xf32>
    %cst_3 = arith.constant 8.000000e+00 : f32
    %10 = vector.broadcast %cst_3 : f32 to vector<1x16xf32>
    %11 = arith.divf %9, %10 : vector<1x16xf32>
    %cst_4 = arith.constant 9.99999974E-6 : f32
    %12 = vector.broadcast %cst_4 : f32 to vector<1x16xf32>
    %13 = arith.addf %11, %12 : vector<1x16xf32>
    %14 = math.rsqrt %13 : vector<1x16xf32>
    %15 = vector.broadcast %14 : vector<1x16xf32> to vector<8x16xf32>
    %16 = arith.mulf %6, %15 : vector<8x16xf32>
    %c0_5 = arith.constant 0 : index
    %c0_6 = arith.constant 0 : index
    %17 = vector.load %arg1[%c0_5, %c0_6] : memref<8x4xf32, #tpu.memory_space<vmem>>, vector<8x4xf32>
    %c424 = arith.constant 424 : index
    %c0_7 = arith.constant 0 : index
    %18 = vector.load %arg2[%c424, %c0_7] : memref<432x128xf32, #tpu.memory_space<vmem>>, vector<8x128xf32>
    %19 = vector.extract_strided_slice %18 {offsets = [2, 0], sizes = [1, 128], strides = [1, 1]} : vector<8x128xf32> to vector<1x128xf32>
    %20 = vector.extract_strided_slice %18 {offsets = [3, 0], sizes = [1, 128], strides = [1, 1]} : vector<8x128xf32> to vector<1x128xf32>
    %21 = vector.extract_strided_slice %18 {offsets = [4, 0], sizes = [1, 128], strides = [1, 1]} : vector<8x128xf32> to vector<1x128xf32>
    %22 = vector.extract_strided_slice %18 {offsets = [5, 0], sizes = [1, 128], strides = [1, 1]} : vector<8x128xf32> to vector<1x128xf32>
    %23 = vector.shape_cast %19 : vector<1x128xf32> to vector<1x128xf32>
    %24 = vector.broadcast %23 : vector<1x128xf32> to vector<8x128xf32>
    %c288 = arith.constant 288 : index
    %c0_8 = arith.constant 0 : index
    %25 = vector.load %arg2[%c288, %c0_8] : memref<432x128xf32, #tpu.memory_space<vmem>>, vector<8x128xf32>
    %26 = vector.extract_strided_slice %17 {offsets = [0, 0], sizes = [8, 1], strides = [1, 1]} : vector<8x4xf32> to vector<8x1xf32>
    %27 = vector.extract_strided_slice %25 {offsets = [0, 0], sizes = [1, 128], strides = [1, 1]} : vector<8x128xf32> to vector<1x128xf32>
    %28 = vector.broadcast %26 : vector<8x1xf32> to vector<8x128xf32>
    %29 = vector.broadcast %27 : vector<1x128xf32> to vector<8x128xf32>
    %30 = arith.mulf %28, %29 : vector<8x128xf32>
    %31 = arith.addf %24, %30 : vector<8x128xf32>
    %32 = vector.extract_strided_slice %17 {offsets = [0, 1], sizes = [8, 1], strides = [1, 1]} : vector<8x4xf32> to vector<8x1xf32>
    %33 = vector.extract_strided_slice %25 {offsets = [1, 0], sizes = [1, 128], strides = [1, 1]} : vector<8x128xf32> to vector<1x128xf32>
    %34 = vector.broadcast %32 : vector<8x1xf32> to vector<8x128xf32>
    %35 = vector.broadcast %33 : vector<1x128xf32> to vector<8x128xf32>
    %36 = arith.mulf %34, %35 : vector<8x128xf32>
    %37 = arith.addf %31, %36 : vector<8x128xf32>
    %38 = vector.extract_strided_slice %17 {offsets = [0, 2], sizes = [8, 1], strides = [1, 1]} : vector<8x4xf32> to vector<8x1xf32>
    %39 = vector.extract_strided_slice %25 {offsets = [2, 0], sizes = [1, 128], strides = [1, 1]} : vector<8x128xf32> to vector<1x128xf32>
    %40 = vector.broadcast %38 : vector<8x1xf32> to vector<8x128xf32>
    %41 = vector.broadcast %39 : vector<1x128xf32> to vector<8x128xf32>
    %42 = arith.mulf %40, %41 : vector<8x128xf32>
    %43 = arith.addf %37, %42 : vector<8x128xf32>
    %44 = vector.extract_strided_slice %17 {offsets = [0, 3], sizes = [8, 1], strides = [1, 1]} : vector<8x4xf32> to vector<8x1xf32>
    %45 = vector.extract_strided_slice %25 {offsets = [3, 0], sizes = [1, 128], strides = [1, 1]} : vector<8x128xf32> to vector<1x128xf32>
    %46 = vector.broadcast %44 : vector<8x1xf32> to vector<8x128xf32>
    %47 = vector.broadcast %45 : vector<1x128xf32> to vector<8x128xf32>
    %48 = arith.mulf %46, %47 : vector<8x128xf32>
    %49 = arith.addf %43, %48 : vector<8x128xf32>
    %c0_9 = arith.constant 0 : index
    %c0_10 = arith.constant 0 : index
    %50 = vector.load %arg2[%c0_9, %c0_10] : memref<432x128xf32, #tpu.memory_space<vmem>>, vector<16x128xf32>
    %51 = vector.extract_strided_slice %18 {offsets = [0, 0], sizes = [1, 128], strides = [1, 1]} : vector<8x128xf32> to vector<1x128xf32>
    %52 = vector.shape_cast %51 : vector<1x128xf32> to vector<1x128xf32>
    %53 = vector.broadcast %52 : vector<1x128xf32> to vector<8x128xf32>
    %54 = vector.extract_strided_slice %16 {offsets = [0, 0], sizes = [8, 1], strides = [1, 1]} : vector<8x16xf32> to vector<8x1xf32>
    %55 = vector.extract_strided_slice %50 {offsets = [0, 0], sizes = [1, 128], strides = [1, 1]} : vector<16x128xf32> to vector<1x128xf32>
    %56 = vector.broadcast %54 : vector<8x1xf32> to vector<8x128xf32>
    %57 = vector.broadcast %55 : vector<1x128xf32> to vector<8x128xf32>
    %58 = arith.mulf %56, %57 : vector<8x128xf32>
    %59 = arith.addf %53, %58 : vector<8x128xf32>
    %60 = vector.extract_strided_slice %16 {offsets = [0, 1], sizes = [8, 1], strides = [1, 1]} : vector<8x16xf32> to vector<8x1xf32>
    %61 = vector.extract_strided_slice %50 {offsets = [1, 0], sizes = [1, 128], strides = [1, 1]} : vector<16x128xf32> to vector<1x128xf32>
    %62 = vector.broadcast %60 : vector<8x1xf32> to vector<8x128xf32>
    %63 = vector.broadcast %61 : vector<1x128xf32> to vector<8x128xf32>
    %64 = arith.mulf %62, %63 : vector<8x128xf32>
    %65 = arith.addf %59, %64 : vector<8x128xf32>
    %66 = vector.extract_strided_slice %16 {offsets = [0, 2], sizes = [8, 1], strides = [1, 1]} : vector<8x16xf32> to vector<8x1xf32>
    %67 = vector.extract_strided_slice %50 {offsets = [2, 0], sizes = [1, 128], strides = [1, 1]} : vector<16x128xf32> to vector<1x128xf32>
    %68 = vector.broadcast %66 : vector<8x1xf32> to vector<8x128xf32>
    %69 = vector.broadcast %67 : vector<1x128xf32> to vector<8x128xf32>
    %70 = arith.mulf %68, %69 : vector<8x128xf32>
    %71 = arith.addf %65, %70 : vector<8x128xf32>
    %72 = vector.extract_strided_slice %16 {offsets = [0, 3], sizes = [8, 1], strides = [1, 1]} : vector<8x16xf32> to vector<8x1xf32>
    %73 = vector.extract_strided_slice %50 {offsets = [3, 0], sizes = [1, 128], strides = [1, 1]} : vector<16x128xf32> to vector<1x128xf32>
    %74 = vector.broadcast %72 : vector<8x1xf32> to vector<8x128xf32>
    %75 = vector.broadcast %73 : vector<1x128xf32> to vector<8x128xf32>
    %76 = arith.mulf %74, %75 : vector<8x128xf32>
    %77 = arith.addf %71, %76 : vector<8x128xf32>
    %78 = vector.extract_strided_slice %16 {offsets = [0, 4], sizes = [8, 1], strides = [1, 1]} : vector<8x16xf32> to vector<8x1xf32>
    %79 = vector.extract_strided_slice %50 {offsets = [4, 0], sizes = [1, 128], strides = [1, 1]} : vector<16x128xf32> to vector<1x128xf32>
    %80 = vector.broadcast %78 : vector<8x1xf32> to vector<8x128xf32>
    %81 = vector.broadcast %79 : vector<1x128xf32> to vector<8x128xf32>
    %82 = arith.mulf %80, %81 : vector<8x128xf32>
    %83 = arith.addf %77, %82 : vector<8x128xf32>
    %84 = vector.extract_strided_slice %16 {offsets = [0, 5], sizes = [8, 1], strides = [1, 1]} : vector<8x16xf32> to vector<8x1xf32>
    %85 = vector.extract_strided_slice %50 {offsets = [5, 0], sizes = [1, 128], strides = [1, 1]} : vector<16x128xf32> to vector<1x128xf32>
    %86 = vector.broadcast %84 : vector<8x1xf32> to vector<8x128xf32>
    %87 = vector.broadcast %85 : vector<1x128xf32> to vector<8x128xf32>
    %88 = arith.mulf %86, %87 : vector<8x128xf32>
    %89 = arith.addf %83, %88 : vector<8x128xf32>
    %90 = vector.extract_strided_slice %16 {offsets = [0, 6], sizes = [8, 1], strides = [1, 1]} : vector<8x16xf32> to vector<8x1xf32>
    %91 = vector.extract_strided_slice %50 {offsets = [6, 0], sizes = [1, 128], strides = [1, 1]} : vector<16x128xf32> to vector<1x128xf32>
    %92 = vector.broadcast %90 : vector<8x1xf32> to vector<8x128xf32>
    %93 = vector.broadcast %91 : vector<1x128xf32> to vector<8x128xf32>
    %94 = arith.mulf %92, %93 : vector<8x128xf32>
    %95 = arith.addf %89, %94 : vector<8x128xf32>
    %96 = vector.extract_strided_slice %16 {offsets = [0, 7], sizes = [8, 1], strides = [1, 1]} : vector<8x16xf32> to vector<8x1xf32>
    %97 = vector.extract_strided_slice %50 {offsets = [7, 0], sizes = [1, 128], strides = [1, 1]} : vector<16x128xf32> to vector<1x128xf32>
    %98 = vector.broadcast %96 : vector<8x1xf32> to vector<8x128xf32>
    %99 = vector.broadcast %97 : vector<1x128xf32> to vector<8x128xf32>
    %100 = arith.mulf %98, %99 : vector<8x128xf32>
    %101 = arith.addf %95, %100 : vector<8x128xf32>
    %102 = vector.extract_strided_slice %16 {offsets = [0, 8], sizes = [8, 1], strides = [1, 1]} : vector<8x16xf32> to vector<8x1xf32>
    %103 = vector.extract_strided_slice %50 {offsets = [8, 0], sizes = [1, 128], strides = [1, 1]} : vector<16x128xf32> to vector<1x128xf32>
    %104 = vector.broadcast %102 : vector<8x1xf32> to vector<8x128xf32>
    %105 = vector.broadcast %103 : vector<1x128xf32> to vector<8x128xf32>
    %106 = arith.mulf %104, %105 : vector<8x128xf32>
    %107 = arith.addf %101, %106 : vector<8x128xf32>
    %108 = vector.extract_strided_slice %16 {offsets = [0, 9], sizes = [8, 1], strides = [1, 1]} : vector<8x16xf32> to vector<8x1xf32>
    %109 = vector.extract_strided_slice %50 {offsets = [9, 0], sizes = [1, 128], strides = [1, 1]} : vector<16x128xf32> to vector<1x128xf32>
    %110 = vector.broadcast %108 : vector<8x1xf32> to vector<8x128xf32>
    %111 = vector.broadcast %109 : vector<1x128xf32> to vector<8x128xf32>
    %112 = arith.mulf %110, %111 : vector<8x128xf32>
    %113 = arith.addf %107, %112 : vector<8x128xf32>
    %114 = vector.extract_strided_slice %16 {offsets = [0, 10], sizes = [8, 1], strides = [1, 1]} : vector<8x16xf32> to vector<8x1xf32>
    %115 = vector.extract_strided_slice %50 {offsets = [10, 0], sizes = [1, 128], strides = [1, 1]} : vector<16x128xf32> to vector<1x128xf32>
    %116 = vector.broadcast %114 : vector<8x1xf32> to vector<8x128xf32>
    %117 = vector.broadcast %115 : vector<1x128xf32> to vector<8x128xf32>
    %118 = arith.mulf %116, %117 : vector<8x128xf32>
    %119 = arith.addf %113, %118 : vector<8x128xf32>
    %120 = vector.extract_strided_slice %16 {offsets = [0, 11], sizes = [8, 1], strides = [1, 1]} : vector<8x16xf32> to vector<8x1xf32>
    %121 = vector.extract_strided_slice %50 {offsets = [11, 0], sizes = [1, 128], strides = [1, 1]} : vector<16x128xf32> to vector<1x128xf32>
    %122 = vector.broadcast %120 : vector<8x1xf32> to vector<8x128xf32>
    %123 = vector.broadcast %121 : vector<1x128xf32> to vector<8x128xf32>
    %124 = arith.mulf %122, %123 : vector<8x128xf32>
    %125 = arith.addf %119, %124 : vector<8x128xf32>
    %126 = vector.extract_strided_slice %16 {offsets = [0, 12], sizes = [8, 1], strides = [1, 1]} : vector<8x16xf32> to vector<8x1xf32>
    %127 = vector.extract_strided_slice %50 {offsets = [12, 0], sizes = [1, 128], strides = [1, 1]} : vector<16x128xf32> to vector<1x128xf32>
    %128 = vector.broadcast %126 : vector<8x1xf32> to vector<8x128xf32>
    %129 = vector.broadcast %127 : vector<1x128xf32> to vector<8x128xf32>
    %130 = arith.mulf %128, %129 : vector<8x128xf32>
    %131 = arith.addf %125, %130 : vector<8x128xf32>
    %132 = vector.extract_strided_slice %16 {offsets = [0, 13], sizes = [8, 1], strides = [1, 1]} : vector<8x16xf32> to vector<8x1xf32>
    %133 = vector.extract_strided_slice %50 {offsets = [13, 0], sizes = [1, 128], strides = [1, 1]} : vector<16x128xf32> to vector<1x128xf32>
    %134 = vector.broadcast %132 : vector<8x1xf32> to vector<8x128xf32>
    %135 = vector.broadcast %133 : vector<1x128xf32> to vector<8x128xf32>
    %136 = arith.mulf %134, %135 : vector<8x128xf32>
    %137 = arith.addf %131, %136 : vector<8x128xf32>
    %138 = vector.extract_strided_slice %16 {offsets = [0, 14], sizes = [8, 1], strides = [1, 1]} : vector<8x16xf32> to vector<8x1xf32>
    %139 = vector.extract_strided_slice %50 {offsets = [14, 0], sizes = [1, 128], strides = [1, 1]} : vector<16x128xf32> to vector<1x128xf32>
    %140 = vector.broadcast %138 : vector<8x1xf32> to vector<8x128xf32>
    %141 = vector.broadcast %139 : vector<1x128xf32> to vector<8x128xf32>
    %142 = arith.mulf %140, %141 : vector<8x128xf32>
    %143 = arith.addf %137, %142 : vector<8x128xf32>
    %144 = vector.extract_strided_slice %16 {offsets = [0, 15], sizes = [8, 1], strides = [1, 1]} : vector<8x16xf32> to vector<8x1xf32>
    %145 = vector.extract_strided_slice %50 {offsets = [15, 0], sizes = [1, 128], strides = [1, 1]} : vector<16x128xf32> to vector<1x128xf32>
    %146 = vector.broadcast %144 : vector<8x1xf32> to vector<8x128xf32>
    %147 = vector.broadcast %145 : vector<1x128xf32> to vector<8x128xf32>
    %148 = arith.mulf %146, %147 : vector<8x128xf32>
    %149 = arith.addf %143, %148 : vector<8x128xf32>
    %cst_11 = arith.constant 0.000000e+00 : f32
    %150 = vector.broadcast %cst_11 : f32 to vector<8x128xf32>
    %151 = arith.cmpf ogt, %149, %150 : vector<8x128xf32>
    %cst_12 = arith.constant 0.00999999977 : f32
    %152 = vector.broadcast %cst_12 : f32 to vector<8x128xf32>
    %153 = arith.mulf %152, %149 : vector<8x128xf32>
    %154 = arith.select %151, %149, %153 : vector<8x128xi1>, vector<8x128xf32>
    %c32 = arith.constant 32 : index
    %c0_13 = arith.constant 0 : index
    %155 = vector.load %arg2[%c32, %c0_13] : memref<432x128xf32, #tpu.memory_space<vmem>>, vector<128x128xf32>
    %cst_14 = arith.constant dense<0.000000e+00> : vector<8x128xf32>
    %156 = tpu.matmul %154, %155, %cst_14 {dimension_numbers = #tpu.dot_dimension_numbers<[1], [0], [0], [1], [0, 0, 1, 1], [], []>} : vector<8x128xf32>, vector<128x128xf32>, vector<8x128xf32> -> vector<8x128xf32>
    %157 = arith.addf %49, %156 : vector<8x128xf32>
    %c16 = arith.constant 16 : index
    %c0_15 = arith.constant 0 : index
    %158 = vector.load %arg2[%c16, %c0_15] : memref<432x128xf32, #tpu.memory_space<vmem>>, vector<16x128xf32>
    %159 = vector.extract_strided_slice %18 {offsets = [1, 0], sizes = [1, 128], strides = [1, 1]} : vector<8x128xf32> to vector<1x128xf32>
    %160 = vector.shape_cast %159 : vector<1x128xf32> to vector<1x128xf32>
    %161 = vector.broadcast %160 : vector<1x128xf32> to vector<8x128xf32>
    %162 = vector.extract_strided_slice %16 {offsets = [0, 0], sizes = [8, 1], strides = [1, 1]} : vector<8x16xf32> to vector<8x1xf32>
    %163 = vector.extract_strided_slice %158 {offsets = [0, 0], sizes = [1, 128], strides = [1, 1]} : vector<16x128xf32> to vector<1x128xf32>
    %164 = vector.broadcast %162 : vector<8x1xf32> to vector<8x128xf32>
    %165 = vector.broadcast %163 : vector<1x128xf32> to vector<8x128xf32>
    %166 = arith.mulf %164, %165 : vector<8x128xf32>
    %167 = arith.addf %161, %166 : vector<8x128xf32>
    %168 = vector.extract_strided_slice %16 {offsets = [0, 1], sizes = [8, 1], strides = [1, 1]} : vector<8x16xf32> to vector<8x1xf32>
    %169 = vector.extract_strided_slice %158 {offsets = [1, 0], sizes = [1, 128], strides = [1, 1]} : vector<16x128xf32> to vector<1x128xf32>
    %170 = vector.broadcast %168 : vector<8x1xf32> to vector<8x128xf32>
    %171 = vector.broadcast %169 : vector<1x128xf32> to vector<8x128xf32>
    %172 = arith.mulf %170, %171 : vector<8x128xf32>
    %173 = arith.addf %167, %172 : vector<8x128xf32>
    %174 = vector.extract_strided_slice %16 {offsets = [0, 2], sizes = [8, 1], strides = [1, 1]} : vector<8x16xf32> to vector<8x1xf32>
    %175 = vector.extract_strided_slice %158 {offsets = [2, 0], sizes = [1, 128], strides = [1, 1]} : vector<16x128xf32> to vector<1x128xf32>
    %176 = vector.broadcast %174 : vector<8x1xf32> to vector<8x128xf32>
    %177 = vector.broadcast %175 : vector<1x128xf32> to vector<8x128xf32>
    %178 = arith.mulf %176, %177 : vector<8x128xf32>
    %179 = arith.addf %173, %178 : vector<8x128xf32>
    %180 = vector.extract_strided_slice %16 {offsets = [0, 3], sizes = [8, 1], strides = [1, 1]} : vector<8x16xf32> to vector<8x1xf32>
    %181 = vector.extract_strided_slice %158 {offsets = [3, 0], sizes = [1, 128], strides = [1, 1]} : vector<16x128xf32> to vector<1x128xf32>
    %182 = vector.broadcast %180 : vector<8x1xf32> to vector<8x128xf32>
    %183 = vector.broadcast %181 : vector<1x128xf32> to vector<8x128xf32>
    %184 = arith.mulf %182, %183 : vector<8x128xf32>
    %185 = arith.addf %179, %184 : vector<8x128xf32>
    %186 = vector.extract_strided_slice %16 {offsets = [0, 4], sizes = [8, 1], strides = [1, 1]} : vector<8x16xf32> to vector<8x1xf32>
    %187 = vector.extract_strided_slice %158 {offsets = [4, 0], sizes = [1, 128], strides = [1, 1]} : vector<16x128xf32> to vector<1x128xf32>
    %188 = vector.broadcast %186 : vector<8x1xf32> to vector<8x128xf32>
    %189 = vector.broadcast %187 : vector<1x128xf32> to vector<8x128xf32>
    %190 = arith.mulf %188, %189 : vector<8x128xf32>
    %191 = arith.addf %185, %190 : vector<8x128xf32>
    %192 = vector.extract_strided_slice %16 {offsets = [0, 5], sizes = [8, 1], strides = [1, 1]} : vector<8x16xf32> to vector<8x1xf32>
    %193 = vector.extract_strided_slice %158 {offsets = [5, 0], sizes = [1, 128], strides = [1, 1]} : vector<16x128xf32> to vector<1x128xf32>
    %194 = vector.broadcast %192 : vector<8x1xf32> to vector<8x128xf32>
    %195 = vector.broadcast %193 : vector<1x128xf32> to vector<8x128xf32>
    %196 = arith.mulf %194, %195 : vector<8x128xf32>
    %197 = arith.addf %191, %196 : vector<8x128xf32>
    %198 = vector.extract_strided_slice %16 {offsets = [0, 6], sizes = [8, 1], strides = [1, 1]} : vector<8x16xf32> to vector<8x1xf32>
    %199 = vector.extract_strided_slice %158 {offsets = [6, 0], sizes = [1, 128], strides = [1, 1]} : vector<16x128xf32> to vector<1x128xf32>
    %200 = vector.broadcast %198 : vector<8x1xf32> to vector<8x128xf32>
    %201 = vector.broadcast %199 : vector<1x128xf32> to vector<8x128xf32>
    %202 = arith.mulf %200, %201 : vector<8x128xf32>
    %203 = arith.addf %197, %202 : vector<8x128xf32>
    %204 = vector.extract_strided_slice %16 {offsets = [0, 7], sizes = [8, 1], strides = [1, 1]} : vector<8x16xf32> to vector<8x1xf32>
    %205 = vector.extract_strided_slice %158 {offsets = [7, 0], sizes = [1, 128], strides = [1, 1]} : vector<16x128xf32> to vector<1x128xf32>
    %206 = vector.broadcast %204 : vector<8x1xf32> to vector<8x128xf32>
    %207 = vector.broadcast %205 : vector<1x128xf32> to vector<8x128xf32>
    %208 = arith.mulf %206, %207 : vector<8x128xf32>
    %209 = arith.addf %203, %208 : vector<8x128xf32>
    %210 = vector.extract_strided_slice %16 {offsets = [0, 8], sizes = [8, 1], strides = [1, 1]} : vector<8x16xf32> to vector<8x1xf32>
    %211 = vector.extract_strided_slice %158 {offsets = [8, 0], sizes = [1, 128], strides = [1, 1]} : vector<16x128xf32> to vector<1x128xf32>
    %212 = vector.broadcast %210 : vector<8x1xf32> to vector<8x128xf32>
    %213 = vector.broadcast %211 : vector<1x128xf32> to vector<8x128xf32>
    %214 = arith.mulf %212, %213 : vector<8x128xf32>
    %215 = arith.addf %209, %214 : vector<8x128xf32>
    %216 = vector.extract_strided_slice %16 {offsets = [0, 9], sizes = [8, 1], strides = [1, 1]} : vector<8x16xf32> to vector<8x1xf32>
    %217 = vector.extract_strided_slice %158 {offsets = [9, 0], sizes = [1, 128], strides = [1, 1]} : vector<16x128xf32> to vector<1x128xf32>
    %218 = vector.broadcast %216 : vector<8x1xf32> to vector<8x128xf32>
    %219 = vector.broadcast %217 : vector<1x128xf32> to vector<8x128xf32>
    %220 = arith.mulf %218, %219 : vector<8x128xf32>
    %221 = arith.addf %215, %220 : vector<8x128xf32>
    %222 = vector.extract_strided_slice %16 {offsets = [0, 10], sizes = [8, 1], strides = [1, 1]} : vector<8x16xf32> to vector<8x1xf32>
    %223 = vector.extract_strided_slice %158 {offsets = [10, 0], sizes = [1, 128], strides = [1, 1]} : vector<16x128xf32> to vector<1x128xf32>
    %224 = vector.broadcast %222 : vector<8x1xf32> to vector<8x128xf32>
    %225 = vector.broadcast %223 : vector<1x128xf32> to vector<8x128xf32>
    %226 = arith.mulf %224, %225 : vector<8x128xf32>
    %227 = arith.addf %221, %226 : vector<8x128xf32>
    %228 = vector.extract_strided_slice %16 {offsets = [0, 11], sizes = [8, 1], strides = [1, 1]} : vector<8x16xf32> to vector<8x1xf32>
    %229 = vector.extract_strided_slice %158 {offsets = [11, 0], sizes = [1, 128], strides = [1, 1]} : vector<16x128xf32> to vector<1x128xf32>
    %230 = vector.broadcast %228 : vector<8x1xf32> to vector<8x128xf32>
    %231 = vector.broadcast %229 : vector<1x128xf32> to vector<8x128xf32>
    %232 = arith.mulf %230, %231 : vector<8x128xf32>
    %233 = arith.addf %227, %232 : vector<8x128xf32>
    %234 = vector.extract_strided_slice %16 {offsets = [0, 12], sizes = [8, 1], strides = [1, 1]} : vector<8x16xf32> to vector<8x1xf32>
    %235 = vector.extract_strided_slice %158 {offsets = [12, 0], sizes = [1, 128], strides = [1, 1]} : vector<16x128xf32> to vector<1x128xf32>
    %236 = vector.broadcast %234 : vector<8x1xf32> to vector<8x128xf32>
    %237 = vector.broadcast %235 : vector<1x128xf32> to vector<8x128xf32>
    %238 = arith.mulf %236, %237 : vector<8x128xf32>
    %239 = arith.addf %233, %238 : vector<8x128xf32>
    %240 = vector.extract_strided_slice %16 {offsets = [0, 13], sizes = [8, 1], strides = [1, 1]} : vector<8x16xf32> to vector<8x1xf32>
    %241 = vector.extract_strided_slice %158 {offsets = [13, 0], sizes = [1, 128], strides = [1, 1]} : vector<16x128xf32> to vector<1x128xf32>
    %242 = vector.broadcast %240 : vector<8x1xf32> to vector<8x128xf32>
    %243 = vector.broadcast %241 : vector<1x128xf32> to vector<8x128xf32>
    %244 = arith.mulf %242, %243 : vector<8x128xf32>
    %245 = arith.addf %239, %244 : vector<8x128xf32>
    %246 = vector.extract_strided_slice %16 {offsets = [0, 14], sizes = [8, 1], strides = [1, 1]} : vector<8x16xf32> to vector<8x1xf32>
    %247 = vector.extract_strided_slice %158 {offsets = [14, 0], sizes = [1, 128], strides = [1, 1]} : vector<16x128xf32> to vector<1x128xf32>
    %248 = vector.broadcast %246 : vector<8x1xf32> to vector<8x128xf32>
    %249 = vector.broadcast %247 : vector<1x128xf32> to vector<8x128xf32>
    %250 = arith.mulf %248, %249 : vector<8x128xf32>
    %251 = arith.addf %245, %250 : vector<8x128xf32>
    %252 = vector.extract_strided_slice %16 {offsets = [0, 15], sizes = [8, 1], strides = [1, 1]} : vector<8x16xf32> to vector<8x1xf32>
    %253 = vector.extract_strided_slice %158 {offsets = [15, 0], sizes = [1, 128], strides = [1, 1]} : vector<16x128xf32> to vector<1x128xf32>
    %254 = vector.broadcast %252 : vector<8x1xf32> to vector<8x128xf32>
    %255 = vector.broadcast %253 : vector<1x128xf32> to vector<8x128xf32>
    %256 = arith.mulf %254, %255 : vector<8x128xf32>
    %257 = arith.addf %251, %256 : vector<8x128xf32>
    %cst_16 = arith.constant 0.000000e+00 : f32
    %258 = vector.broadcast %cst_16 : f32 to vector<8x128xf32>
    %259 = arith.cmpf ogt, %257, %258 : vector<8x128xf32>
    %cst_17 = arith.constant 0.00999999977 : f32
    %260 = vector.broadcast %cst_17 : f32 to vector<8x128xf32>
    %261 = arith.mulf %260, %257 : vector<8x128xf32>
    %262 = arith.select %259, %257, %261 : vector<8x128xi1>, vector<8x128xf32>
    %c160 = arith.constant 160 : index
    %c0_18 = arith.constant 0 : index
    %263 = vector.load %arg2[%c160, %c0_18] : memref<432x128xf32, #tpu.memory_space<vmem>>, vector<128x128xf32>
    %cst_19 = arith.constant dense<0.000000e+00> : vector<8x128xf32>
    %264 = tpu.matmul %262, %263, %cst_19 {dimension_numbers = #tpu.dot_dimension_numbers<[1], [0], [0], [1], [0, 0, 1, 1], [], []>} : vector<8x128xf32>, vector<128x128xf32>, vector<8x128xf32> -> vector<8x128xf32>
    %265 = arith.addf %157, %264 : vector<8x128xf32>
    %cst_20 = arith.constant 0.000000e+00 : f32
    %266 = vector.broadcast %cst_20 : f32 to vector<8x128xf32>
    %267 = arith.cmpf ogt, %265, %266 : vector<8x128xf32>
    %cst_21 = arith.constant 0.00999999977 : f32
    %268 = vector.broadcast %cst_21 : f32 to vector<8x128xf32>
    %269 = arith.mulf %268, %265 : vector<8x128xf32>
    %270 = arith.select %267, %265, %269 : vector<8x128xi1>, vector<8x128xf32>
    %c296 = arith.constant 296 : index
    %c0_22 = arith.constant 0 : index
    %271 = vector.load %arg2[%c296, %c0_22] : memref<432x128xf32, #tpu.memory_space<vmem>>, vector<128x128xf32>
    %cst_23 = arith.constant dense<0.000000e+00> : vector<8x128xf32>
    %272 = tpu.matmul %270, %271, %cst_23 {dimension_numbers = #tpu.dot_dimension_numbers<[1], [0], [0], [1], [0, 0, 1, 1], [], []>} : vector<8x128xf32>, vector<128x128xf32>, vector<8x128xf32> -> vector<8x128xf32>
    %273 = vector.broadcast %20 : vector<1x128xf32> to vector<8x128xf32>
    %274 = arith.addf %272, %273 : vector<8x128xf32>
    %cst_24 = arith.constant 0.000000e+00 : f32
    %275 = vector.broadcast %cst_24 : f32 to vector<8x128xf32>
    %276 = arith.cmpf ogt, %274, %275 : vector<8x128xf32>
    %cst_25 = arith.constant 0.00999999977 : f32
    %277 = vector.broadcast %cst_25 : f32 to vector<8x128xf32>
    %278 = arith.mulf %277, %274 : vector<8x128xf32>
    %279 = arith.select %276, %274, %278 : vector<8x128xi1>, vector<8x128xf32>
    %280 = vector.broadcast %21 : vector<1x128xf32> to vector<8x128xf32>
    %281 = arith.mulf %279, %280 : vector<8x128xf32>
    %cst_26 = arith.constant dense<0.000000e+00> : vector<8xf32>
    %282 = vector.multi_reduction <add>, %281, %cst_26 [1] : vector<8x128xf32> to vector<8xf32>
    %283 = vector.shape_cast %282 : vector<8xf32> to vector<8x1xf32>
    %284 = vector.shape_cast %283 : vector<8x1xf32> to vector<8x1xf32>
    %285 = vector.broadcast %284 : vector<8x1xf32> to vector<8x128xf32>
    %286 = vector.broadcast %22 : vector<1x128xf32> to vector<8x128xf32>
    %287 = arith.addf %285, %286 : vector<8x128xf32>
    %c0_27 = arith.constant 0 : index
    %c0_28 = arith.constant 0 : index
    %288 = vector.load %arg3[%c0_27, %c0_28] : memref<8x128xf32, #tpu.memory_space<vmem>>, vector<8x128xf32>
    tpu.vector_store %arg3[%c0_27, %c0_28], %287 {strides = array<i32>} : memref<8x128xf32, #tpu.memory_space<vmem>>, vector<8x128xf32>,
    return
  }
}

</mosaic_0001>

<llo_original>
// kernel: forward.1
$region0: #{forward.1}
  #allocation0 [shape = 'u32[]', space=smem, size = 0x4, offset = 0x4, fixed_abs, tag = 'smem constant byte address 0x4 - core index']
  #allocation1 [shape = 'u32[144,128]{1,0:T(1,128)}', space=vmem, size = 0x12000, scoped, tag = 'internal scratch']
  %s0 = inlined_call_operand.vmem [shape: f32[8,16], index: 0, kind: input, shape index: {}]
  %s1 = inlined_call_operand.vmem [shape: f32[8,4], index: 1, kind: input, shape index: {}]
  %s2 = inlined_call_operand.hbm [shape: f32[432,128], index: 2, kind: input, shape index: {}]
  %s3 = inlined_call_operand.vmem [shape: f32[8,128], index: 3, kind: output, shape index: {}]
  %s4 = sld [smem:[#allocation0]]
  $region26: #{forward.1} parent=0
    _
  %s6 = ssub.s32 1, %s4
  %s7 = scalar_select 0, %s6, %s4
  $region1: #{forward.1} parent=0
    #allocation2 [shape = 'u8[221184]{0}', space=vmem, size = 0x36000, scoped, tag = 'input window, operand 2, single buffered']
    #allocation3 [shape = 's32[1]{0}', space=sflag, size = 0x4, scoped, tag = 'scoped memory for forward.1']
    %8 = vsyncpa [#allocation3], 0
    // Predicated region
    $region2: #{forward.1} parent=1 // pred_check
      _
    $region3: #{forward.1} parent=1 // pred_check_branch
      %10 = sbr.rel (0) target = $region5
    $region4: #{forward.1} parent=1 // pred_region
      _
    $region5: #{forward.1} parent=1 // pred_fallthru
      _
    // Predicated region
    $region6: #{forward.1} parent=1 // pred_check
      _
    $region7: #{forward.1} parent=1 // pred_check_branch
      %12 = sbr.rel (0) target = $region9
    $region8: #{forward.1} parent=1 // pred_region
      _
    $region9: #{forward.1} parent=1 // pred_fallthru
      _
    // Predicated region
    $region10: #{forward.1} parent=1 // pred_check
      _
    $region11: #{forward.1} parent=1 // pred_check_branch
      %14 = sbr.rel (0) target = $region13
    $region12: #{forward.1} parent=1 // pred_region
      %s16 = ssub.s32 6912, 6912
      %17 = vsyncadd [#allocation3], %s16
      %s18 = sshll.u32 [#allocation2], 4
      %s19 = int_to_ptr.vmem [resolvable:$true] %s18
      %24 = dma.hbm_to_vmem [thread:$0]  %s2, 6912, %s19, [#allocation3], 128, 128, 8
    $region13: #{forward.1} parent=1 // pred_fallthru
      _
    // Predicated region
    $region14: #{forward.1} parent=1 // pred_check
      _
    $region15: #{forward.1} parent=1 // pred_check_branch
      %26 = sbr.rel (0) target = $region17
    $region16: #{forward.1} parent=1 // pred_region
      %27 = dma.done [#allocation3], 6912
    $region17: #{forward.1} parent=1 // pred_fallthru
      _
    %v28 = vld [vmem:[%s0] sm:$0xff]
    %vm29 = vcmask 130048
    %v30 = vsel %vm29, %v28, 0.0
    %v31 = vrot.slane %v30, 4
    %v32 = vadd.f32 %v30, %v31
    %v33 = vrot.slane %v32, 2
    %v34 = vadd.f32 %v32, %v33
    %v35 = vrot.slane %v34, 1
    %v36 = vadd.f32 %v34, %v35
    %v37 = vrcp.pop 8.0
    %v38 = vmul.f32 %v36, %v37
    %v39 = vsub.f32 %v28, %v38
    %v40 = vmul.f32 %v39, %v39
    %v41 = vsel %vm29, %v40, 0.0
    %v42 = vrot.slane %v41, 4
    %v43 = vadd.f32 %v41, %v42
    %v44 = vrot.slane %v43, 2
    %v45 = vadd.f32 %v43, %v44
    %v46 = vrot.slane %v45, 1
    %v47 = vadd.f32 %v45, %v46
    %v48 = vmul.f32 %v47, %v37
    %v49 = vadd.f32 %v48, 1e-05
    %v50 = vrsqrt.pop %v49
    %v51 = vmul.f32 %v39, %v50
    %v52 = vld [vmem:[%s1] sm:$0xff]
    %v53 = vld [vmem:[#allocation2 + $0x1a8] sm:$0xff]
    %v54 = vlaneseq
    %v55 = vshrl.u32 %v54, 7
    %v56 = vsub.s32 2, %v55
    %v57 = vrot.slane %v53, %v56
    %v58 = vld [vmem:[#allocation2 + $0x120] sm:$0xff]
    %60 = vset.pattern.permute.xlu0 0
    %61 = vperm.xlu0 %60, %v52
    %v62 = vpop.permute.xlu0 %61
    %v64 = vlaneseq
    %v65 = vshrl.u32 %v64, 7
    %v66 = vsub.s32 0, %v65
    %v67 = vrot.slane %v58, %v66
    %v68 = vmul.f32 %v62, %v67
    %v69 = vadd.f32 %v57, %v68
    %70 = vset.pattern.permute.xlu0 1
    %71 = vperm.xlu0 %70, %v52
    %v72 = vpop.permute.xlu0 %71
    %v74 = vlaneseq
    %v75 = vshrl.u32 %v74, 7
    %v76 = vsub.s32 1, %v75
    %v77 = vrot.slane %v58, %v76
    %v78 = vmul.f32 %v72, %v77
    %v79 = vadd.f32 %v69, %v78
    %80 = vset.pattern.permute.xlu0 2
    %81 = vperm.xlu0 %80, %v52
    %v82 = vpop.permute.xlu0 %81
    %v84 = vlaneseq
    %v85 = vshrl.u32 %v84, 7
    %v86 = vsub.s32 2, %v85
    %v87 = vrot.slane %v58, %v86
    %v88 = vmul.f32 %v82, %v87
    %v89 = vadd.f32 %v79, %v88
    %90 = vset.pattern.permute.xlu0 3
    %91 = vperm.xlu0 %90, %v52
    %v92 = vpop.permute.xlu0 %91
    %v94 = vlaneseq
    %v95 = vshrl.u32 %v94, 7
    %v96 = vsub.s32 3, %v95
    %v97 = vrot.slane %v58, %v96
    %v98 = vmul.f32 %v92, %v97
    %v99 = vadd.f32 %v89, %v98
    %v100 = vld [vmem:[#allocation2] sm:$0xff]
    %v101 = vld [vmem:[#allocation2 + $0x8] sm:$0xff]
    %v102 = vlaneseq
    %v103 = vshrl.u32 %v102, 7
    %v104 = vsub.s32 0, %v103
    %v105 = vrot.slane %v53, %v104
    %107 = vset.pattern.permute.xlu0 0
    %108 = vperm.xlu0 %107, %v51
    %v109 = vpop.permute.xlu0 %108
    %v111 = vlaneseq
    %v112 = vshrl.u32 %v111, 7
    %v113 = vsub.s32 0, %v112
    %v114 = vrot.slane %v100, %v113
    %v115 = vmul.f32 %v109, %v114
    %v116 = vadd.f32 %v105, %v115
    %117 = vset.pattern.permute.xlu0 1
    %118 = vperm.xlu0 %117, %v51
    %v119 = vpop.permute.xlu0 %118
    %v121 = vlaneseq
    %v122 = vshrl.u32 %v121, 7
    %v123 = vsub.s32 1, %v122
    %v124 = vrot.slane %v100, %v123
    %v125 = vmul.f32 %v119, %v124
    %v126 = vadd.f32 %v116, %v125
    %127 = vset.pattern.permute.xlu0 2
    %128 = vperm.xlu0 %127, %v51
    %v129 = vpop.permute.xlu0 %128
    %v131 = vlaneseq
    %v132 = vshrl.u32 %v131, 7
    %v133 = vsub.s32 2, %v132
    %v134 = vrot.slane %v100, %v133
    %v135 = vmul.f32 %v129, %v134
    %v136 = vadd.f32 %v126, %v135
    %137 = vset.pattern.permute.xlu0 3
    %138 = vperm.xlu0 %137, %v51
    %v139 = vpop.permute.xlu0 %138
    %v141 = vlaneseq
    %v142 = vshrl.u32 %v141, 7
    %v143 = vsub.s32 3, %v142
    %v144 = vrot.slane %v100, %v143
    %v145 = vmul.f32 %v139, %v144
    %v146 = vadd.f32 %v136, %v145
    %147 = vset.pattern.permute.xlu0 4
    %148 = vperm.xlu0 %147, %v51
    %v149 = vpop.permute.xlu0 %148
    %v151 = vlaneseq
    %v152 = vshrl.u32 %v151, 7
    %v153 = vsub.s32 4, %v152
    %v154 = vrot.slane %v100, %v153
    %v155 = vmul.f32 %v149, %v154
    %v156 = vadd.f32 %v146, %v155
    %157 = vset.pattern.permute.xlu0 5
    %158 = vperm.xlu0 %157, %v51
    %v159 = vpop.permute.xlu0 %158
    %v161 = vlaneseq
    %v162 = vshrl.u32 %v161, 7
    %v163 = vsub.s32 5, %v162
    %v164 = vrot.slane %v100, %v163
    %v165 = vmul.f32 %v159, %v164
    %v166 = vadd.f32 %v156, %v165
    %167 = vset.pattern.permute.xlu0 6
    %168 = vperm.xlu0 %167, %v51
    %v169 = vpop.permute.xlu0 %168
    %v171 = vlaneseq
    %v172 = vshrl.u32 %v171, 7
    %v173 = vsub.s32 6, %v172
    %v174 = vrot.slane %v100, %v173
    %v175 = vmul.f32 %v169, %v174
    %v176 = vadd.f32 %v166, %v175
    %177 = vset.pattern.permute.xlu0 7
    %178 = vperm.xlu0 %177, %v51
    %v179 = vpop.permute.xlu0 %178
    %v181 = vlaneseq
    %v182 = vshrl.u32 %v181, 7
    %v183 = vsub.s32 7, %v182
    %v184 = vrot.slane %v100, %v183
    %v185 = vmul.f32 %v179, %v184
    %v186 = vadd.f32 %v176, %v185
    %187 = vset.pattern.permute.xlu0 8
    %188 = vperm.xlu0 %187, %v51
    %v189 = vpop.permute.xlu0 %188
    %v191 = vlaneseq
    %v192 = vshrl.u32 %v191, 7
    %v193 = vsub.s32 0, %v192
    %v194 = vrot.slane %v101, %v193
    %v195 = vmul.f32 %v189, %v194
    %v196 = vadd.f32 %v186, %v195
    %197 = vset.pattern.permute.xlu0 9
    %198 = vperm.xlu0 %197, %v51
    %v199 = vpop.permute.xlu0 %198
    %v201 = vlaneseq
    %v202 = vshrl.u32 %v201, 7
    %v203 = vsub.s32 1, %v202
    %v204 = vrot.slane %v101, %v203
    %v205 = vmul.f32 %v199, %v204
    %v206 = vadd.f32 %v196, %v205
    %207 = vset.pattern.permute.xlu0 10
    %208 = vperm.xlu0 %207, %v51
    %v209 = vpop.permute.xlu0 %208
    %v211 = vlaneseq
    %v212 = vshrl.u32 %v211, 7
    %v213 = vsub.s32 2, %v212
    %v214 = vrot.slane %v101, %v213
    %v215 = vmul.f32 %v209, %v214
    %v216 = vadd.f32 %v206, %v215
    %217 = vset.pattern.permute.xlu0 11
    %218 = vperm.xlu0 %217, %v51
    %v219 = vpop.permute.xlu0 %218
    %v221 = vlaneseq
    %v222 = vshrl.u32 %v221, 7
    %v223 = vsub.s32 3, %v222
    %v224 = vrot.slane %v101, %v223
    %v225 = vmul.f32 %v219, %v224
    %v226 = vadd.f32 %v216, %v225
    %227 = vset.pattern.permute.xlu0 12
    %228 = vperm.xlu0 %227, %v51
    %v229 = vpop.permute.xlu0 %228
    %v231 = vlaneseq
    %v232 = vshrl.u32 %v231, 7
    %v233 = vsub.s32 4, %v232
    %v234 = vrot.slane %v101, %v233
    %v235 = vmul.f32 %v229, %v234
    %v236 = vadd.f32 %v226, %v235
    %237 = vset.pattern.permute.xlu0 13
    %238 = vperm.xlu0 %237, %v51
    %v239 = vpop.permute.xlu0 %238
    %v241 = vlaneseq
    %v242 = vshrl.u32 %v241, 7
    %v243 = vsub.s32 5, %v242
    %v244 = vrot.slane %v101, %v243
    %v245 = vmul.f32 %v239, %v244
    %v246 = vadd.f32 %v236, %v245
    %247 = vset.pattern.permute.xlu0 14
    %248 = vperm.xlu0 %247, %v51
    %v249 = vpop.permute.xlu0 %248
    %v251 = vlaneseq
    %v252 = vshrl.u32 %v251, 7
    %v253 = vsub.s32 6, %v252
    %v254 = vrot.slane %v101, %v253
    %v255 = vmul.f32 %v249, %v254
    %v256 = vadd.f32 %v246, %v255
    %257 = vset.pattern.permute.xlu0 15
    %258 = vperm.xlu0 %257, %v51
    %v259 = vpop.permute.xlu0 %258
    %v261 = vlaneseq
    %v262 = vshrl.u32 %v261, 7
    %v263 = vsub.s32 7, %v262
    %v264 = vrot.slane %v101, %v263
    %v265 = vmul.f32 %v259, %v264
    %v266 = vadd.f32 %v256, %v265
    %vm267 = vcmp.gt.f32.partialorder %v266, 0.0
    %v268 = vmul.f32 %v266, 0.01
    %v269 = vsel %vm267, %v266, %v268
    %v270 = vld [vmem:[#allocation2 + $0x20] sm:$0xff]
    %v271 = vld [vmem:[#allocation2 + $0x28] sm:$0xff]
    %v272 = vld [vmem:[#allocation2 + $0x30] sm:$0xff]
    %v273 = vld [vmem:[#allocation2 + $0x38] sm:$0xff]
    %v274 = vld [vmem:[#allocation2 + $0x40] sm:$0xff]
    %v275 = vld [vmem:[#allocation2 + $0x48] sm:$0xff]
    %v276 = vld [vmem:[#allocation2 + $0x50] sm:$0xff]
    %v277 = vld [vmem:[#allocation2 + $0x58] sm:$0xff]
    %v278 = vld [vmem:[#allocation2 + $0x60] sm:$0xff]
    %v279 = vld [vmem:[#allocation2 + $0x68] sm:$0xff]
    %v280 = vld [vmem:[#allocation2 + $0x70] sm:$0xff]
    %v281 = vld [vmem:[#allocation2 + $0x78] sm:$0xff]
    %v282 = vld [vmem:[#allocation2 + $0x80] sm:$0xff]
    %v283 = vld [vmem:[#allocation2 + $0x88] sm:$0xff]
    %v284 = vld [vmem:[#allocation2 + $0x90] sm:$0xff]
    %v285 = vld [vmem:[#allocation2 + $0x98] sm:$0xff]
    %286 = vmatprep.subr.mxu0 0.0
    %287 = vmatpush1.msra.mxu0 %v270
    %288 = vmatprep.subr.mxu0 0.0
    %289 = vmatpush1.msra.mxu0 %v271
    %290 = vmatprep.subr.mxu0 0.0
    %291 = vmatpush1.msra.mxu0 %v272
    %292 = vmatprep.subr.mxu0 0.0
    %293 = vmatpush1.msra.mxu0 %v273
    %294 = vmatprep.subr.mxu0 0.0
    %295 = vmatpush1.msra.mxu0 %v274
    %296 = vmatprep.subr.mxu0 0.0
    %297 = vmatpush1.msra.mxu0 %v275
    %298 = vmatprep.subr.mxu0 0.0
    %299 = vmatpush1.msra.mxu0 %v276
    %300 = vmatprep.subr.mxu0 0.0
    %301 = vmatpush1.msra.mxu0 %v277
    %302 = vmatprep.subr.mxu0 0.0
    %303 = vmatpush1.msra.mxu0 %v278
    %304 = vmatprep.subr.mxu0 0.0
    %305 = vmatpush1.msra.mxu0 %v279
    %306 = vmatprep.subr.mxu0 0.0
    %307 = vmatpush1.msra.mxu0 %v280
    %308 = vmatprep.subr.mxu0 0.0
    %309 = vmatpush1.msra.mxu0 %v281
    %310 = vmatprep.subr.mxu0 0.0
    %311 = vmatpush1.msra.mxu0 %v282
    %312 = vmatprep.subr.mxu0 0.0
    %313 = vmatpush1.msra.mxu0 %v283
    %314 = vmatprep.subr.mxu0 0.0
    %315 = vmatpush1.msra.mxu0 %v284
    %316 = vmatprep.subr.mxu0 0.0
    %317 = vmatpush1.msra.mxu0 %v285
    %318 = vmatprep.subr.mxu0 0.0
    %319 = vmatpush1.msra.mxu0 0.0
    %320 = vmatprep.subr.mxu0 0.0
    %321 = vmatpush1.msra.mxu0 0.0
    %322 = vmatprep.subr.mxu0 0.0
    %323 = vmatpush1.msra.mxu0 0.0
    %324 = vmatprep.subr.mxu0 0.0
    %325 = vmatpush1.msra.mxu0 0.0
    %326 = vmatprep.subr.mxu0 0.0
    %327 = vmatpush1.msra.mxu0 0.0
    %328 = vmatprep.subr.mxu0 0.0
    %329 = vmatpush1.msra.mxu0 0.0
    %330 = vmatprep.subr.mxu0 0.0
    %331 = vmatpush1.msra.mxu0 0.0
    %332 = vmatprep.subr.mxu0 0.0
    %333 = vmatpush1.msra.mxu0 0.0
    %334 = vmatprep.subr.mxu0 0.0
    %335 = vmatpush1.msra.mxu0 0.0
    %336 = vmatprep.subr.mxu0 0.0
    %337 = vmatpush1.msra.mxu0 0.0
    %338 = vmatprep.subr.mxu0 0.0
    %339 = vmatpush1.msra.mxu0 0.0
    %340 = vmatprep.subr.mxu0 0.0
    %341 = vmatpush1.msra.mxu0 0.0
    %342 = vmatprep.subr.mxu0 0.0
    %343 = vmatpush1.msra.mxu0 0.0
    %344 = vmatprep.subr.mxu0 0.0
    %345 = vmatpush1.msra.mxu0 0.0
    %346 = vmatprep.subr.mxu0 0.0
    %347 = vmatpush1.msra.mxu0 0.0
    %348 = vmatprep.subr.mxu0 0.0
    %349 = vmatpush1.msra.mxu0 0.0
    %350 = vmatprep.mubr.f32.mxu0 0.0
    %351 = vmatmul.mubr.f32.gmra.mrb[0].mxu0 %v269
    %v352 = vpop.f32.mrb[0].mxu0
    %v353 = vadd.f32 0.0, %v352
    %v354 = vpop.f32.mrb[0].mxu0
    %355 = vdwg.mxu0
    %v356 = vadd.f32 %v99, %v353
    %v357 = vld [vmem:[#allocation2 + $0x10] sm:$0xff]
    %v358 = vld [vmem:[#allocation2 + $0x18] sm:$0xff]
    %v359 = vlaneseq
    %v360 = vshrl.u32 %v359, 7
    %v361 = vsub.s32 1, %v360
    %v362 = vrot.slane %v53, %v361
    %v363 = vlaneseq
    %v364 = vshrl.u32 %v363, 7
    %v365 = vsub.s32 0, %v364
    %v366 = vrot.slane %v357, %v365
    %v367 = vmul.f32 %v109, %v366
    %v368 = vadd.f32 %v362, %v367
    %v369 = vlaneseq
    %v370 = vshrl.u32 %v369, 7
    %v371 = vsub.s32 1, %v370
    %v372 = vrot.slane %v357, %v371
    %v373 = vmul.f32 %v119, %v372
    %v374 = vadd.f32 %v368, %v373
    %v375 = vlaneseq
    %v376 = vshrl.u32 %v375, 7
    %v377 = vsub.s32 2, %v376
    %v378 = vrot.slane %v357, %v377
    %v379 = vmul.f32 %v129, %v378
    %v380 = vadd.f32 %v374, %v379
    %v381 = vlaneseq
    %v382 = vshrl.u32 %v381, 7
    %v383 = vsub.s32 3, %v382
    %v384 = vrot.slane %v357, %v383
    %v385 = vmul.f32 %v139, %v384
    %v386 = vadd.f32 %v380, %v385
    %v387 = vlaneseq
    %v388 = vshrl.u32 %v387, 7
    %v389 = vsub.s32 4, %v388
    %v390 = vrot.slane %v357, %v389
    %v391 = vmul.f32 %v149, %v390
    %v392 = vadd.f32 %v386, %v391
    %v393 = vlaneseq
    %v394 = vshrl.u32 %v393, 7
    %v395 = vsub.s32 5, %v394
    %v396 = vrot.slane %v357, %v395
    %v397 = vmul.f32 %v159, %v396
    %v398 = vadd.f32 %v392, %v397
    %v399 = vlaneseq
    %v400 = vshrl.u32 %v399, 7
    %v401 = vsub.s32 6, %v400
    %v402 = vrot.slane %v357, %v401
    %v403 = vmul.f32 %v169, %v402
    %v404 = vadd.f32 %v398, %v403
    %v405 = vlaneseq
    %v406 = vshrl.u32 %v405, 7
    %v407 = vsub.s32 7, %v406
    %v408 = vrot.slane %v357, %v407
    %v409 = vmul.f32 %v179, %v408
    %v410 = vadd.f32 %v404, %v409
    %v411 = vlaneseq
    %v412 = vshrl.u32 %v411, 7
    %v413 = vsub.s32 0, %v412
    %v414 = vrot.slane %v358, %v413
    %v415 = vmul.f32 %v189, %v414
    %v416 = vadd.f32 %v410, %v415
    %v417 = vlaneseq
    %v418 = vshrl.u32 %v417, 7
    %v419 = vsub.s32 1, %v418
    %v420 = vrot.slane %v358, %v419
    %v421 = vmul.f32 %v199, %v420
    %v422 = vadd.f32 %v416, %v421
    %v423 = vlaneseq
    %v424 = vshrl.u32 %v423, 7
    %v425 = vsub.s32 2, %v424
    %v426 = vrot.slane %v358, %v425
    %v427 = vmul.f32 %v209, %v426
    %v428 = vadd.f32 %v422, %v427
    %v429 = vlaneseq
    %v430 = vshrl.u32 %v429, 7
    %v431 = vsub.s32 3, %v430
    %v432 = vrot.slane %v358, %v431
    %v433 = vmul.f32 %v219, %v432
    %v434 = vadd.f32 %v428, %v433
    %v435 = vlaneseq
    %v436 = vshrl.u32 %v435, 7
    %v437 = vsub.s32 4, %v436
    %v438 = vrot.slane %v358, %v437
    %v439 = vmul.f32 %v229, %v438
    %v440 = vadd.f32 %v434, %v439
    %v441 = vlaneseq
    %v442 = vshrl.u32 %v441, 7
    %v443 = vsub.s32 5, %v442
    %v444 = vrot.slane %v358, %v443
    %v445 = vmul.f32 %v239, %v444
    %v446 = vadd.f32 %v440, %v445
    %v447 = vlaneseq
    %v448 = vshrl.u32 %v447, 7
    %v449 = vsub.s32 6, %v448
    %v450 = vrot.slane %v358, %v449
    %v451 = vmul.f32 %v249, %v450
    %v452 = vadd.f32 %v446, %v451
    %v453 = vlaneseq
    %v454 = vshrl.u32 %v453, 7
    %v455 = vsub.s32 7, %v454
    %v456 = vrot.slane %v358, %v455
    %v457 = vmul.f32 %v259, %v456
    %v458 = vadd.f32 %v452, %v457
    %vm459 = vcmp.gt.f32.partialorder %v458, 0.0
    %v460 = vmul.f32 %v458, 0.01
    %v461 = vsel %vm459, %v458, %v460
    %v462 = vld [vmem:[#allocation2 + $0xa0] sm:$0xff]
    %v463 = vld [vmem:[#allocation2 + $0xa8] sm:$0xff]
    %v464 = vld [vmem:[#allocation2 + $0xb0] sm:$0xff]
    %v465 = vld [vmem:[#allocation2 + $0xb8] sm:$0xff]
    %v466 = vld [vmem:[#allocation2 + $0xc0] sm:$0xff]
    %v467 = vld [vmem:[#allocation2 + $0xc8] sm:$0xff]
    %v468 = vld [vmem:[#allocation2 + $0xd0] sm:$0xff]
    %v469 = vld [vmem:[#allocation2 + $0xd8] sm:$0xff]
    %v470 = vld [vmem:[#allocation2 + $0xe0] sm:$0xff]
    %v471 = vld [vmem:[#allocation2 + $0xe8] sm:$0xff]
    %v472 = vld [vmem:[#allocation2 + $0xf0] sm:$0xff]
    %v473 = vld [vmem:[#allocation2 + $0xf8] sm:$0xff]
    %v474 = vld [vmem:[#allocation2 + $0x100] sm:$0xff]
    %v475 = vld [vmem:[#allocation2 + $0x108] sm:$0xff]
    %v476 = vld [vmem:[#allocation2 + $0x110] sm:$0xff]
    %v477 = vld [vmem:[#allocation2 + $0x118] sm:$0xff]
    %478 = vmatprep.subr.mxu0 0.0
    %479 = vmatpush1.msra.mxu0 %v462
    %480 = vmatprep.subr.mxu0 0.0
    %481 = vmatpush1.msra.mxu0 %v463
    %482 = vmatprep.subr.mxu0 0.0
    %483 = vmatpush1.msra.mxu0 %v464
    %484 = vmatprep.subr.mxu0 0.0
    %485 = vmatpush1.msra.mxu0 %v465
    %486 = vmatprep.subr.mxu0 0.0
    %487 = vmatpush1.msra.mxu0 %v466
    %488 = vmatprep.subr.mxu0 0.0
    %489 = vmatpush1.msra.mxu0 %v467
    %490 = vmatprep.subr.mxu0 0.0
    %491 = vmatpush1.msra.mxu0 %v468
    %492 = vmatprep.subr.mxu0 0.0
    %493 = vmatpush1.msra.mxu0 %v469
    %494 = vmatprep.subr.mxu0 0.0
    %495 = vmatpush1.msra.mxu0 %v470
    %496 = vmatprep.subr.mxu0 0.0
    %497 = vmatpush1.msra.mxu0 %v471
    %498 = vmatprep.subr.mxu0 0.0
    %499 = vmatpush1.msra.mxu0 %v472
    %500 = vmatprep.subr.mxu0 0.0
    %501 = vmatpush1.msra.mxu0 %v473
    %502 = vmatprep.subr.mxu0 0.0
    %503 = vmatpush1.msra.mxu0 %v474
    %504 = vmatprep.subr.mxu0 0.0
    %505 = vmatpush1.msra.mxu0 %v475
    %506 = vmatprep.subr.mxu0 0.0
    %507 = vmatpush1.msra.mxu0 %v476
    %508 = vmatprep.subr.mxu0 0.0
    %509 = vmatpush1.msra.mxu0 %v477
    %510 = vmatprep.subr.mxu0 0.0
    %511 = vmatpush1.msra.mxu0 0.0
    %512 = vmatprep.subr.mxu0 0.0
    %513 = vmatpush1.msra.mxu0 0.0
    %514 = vmatprep.subr.mxu0 0.0
    %515 = vmatpush1.msra.mxu0 0.0
    %516 = vmatprep.subr.mxu0 0.0
    %517 = vmatpush1.msra.mxu0 0.0
    %518 = vmatprep.subr.mxu0 0.0
    %519 = vmatpush1.msra.mxu0 0.0
    %520 = vmatprep.subr.mxu0 0.0
    %521 = vmatpush1.msra.mxu0 0.0
    %522 = vmatprep.subr.mxu0 0.0
    %523 = vmatpush1.msra.mxu0 0.0
    %524 = vmatprep.subr.mxu0 0.0
    %525 = vmatpush1.msra.mxu0 0.0
    %526 = vmatprep.subr.mxu0 0.0
    %527 = vmatpush1.msra.mxu0 0.0
    %528 = vmatprep.subr.mxu0 0.0
    %529 = vmatpush1.msra.mxu0 0.0
    %530 = vmatprep.subr.mxu0 0.0
    %531 = vmatpush1.msra.mxu0 0.0
    %532 = vmatprep.subr.mxu0 0.0
    %533 = vmatpush1.msra.mxu0 0.0
    %534 = vmatprep.subr.mxu0 0.0
    %535 = vmatpush1.msra.mxu0 0.0
    %536 = vmatprep.subr.mxu0 0.0
    %537 = vmatpush1.msra.mxu0 0.0
    %538 = vmatprep.subr.mxu0 0.0
    %539 = vmatpush1.msra.mxu0 0.0
    %540 = vmatprep.subr.mxu0 0.0
    %541 = vmatpush1.msra.mxu0 0.0
    %542 = vmatprep.mubr.f32.mxu0 0.0
    %543 = vmatmul.mubr.f32.gmra.mrb[0].mxu0 %v461
    %v544 = vpop.f32.mrb[0].mxu0
    %v545 = vadd.f32 0.0, %v544
    %v546 = vpop.f32.mrb[0].mxu0
    %547 = vdwg.mxu0
    %v548 = vadd.f32 %v356, %v545
    %vm549 = vcmp.gt.f32.partialorder %v548, 0.0
    %v550 = vmul.f32 %v548, 0.01
    %v551 = vsel %vm549, %v548, %v550
    %v552 = vld [vmem:[#allocation2 + $0x128] sm:$0xff]
    %v553 = vld [vmem:[#allocation2 + $0x130] sm:$0xff]
    %v554 = vld [vmem:[#allocation2 + $0x138] sm:$0xff]
    %v555 = vld [vmem:[#allocation2 + $0x140] sm:$0xff]
    %v556 = vld [vmem:[#allocation2 + $0x148] sm:$0xff]
    %v557 = vld [vmem:[#allocation2 + $0x150] sm:$0xff]
    %v558 = vld [vmem:[#allocation2 + $0x158] sm:$0xff]
    %v559 = vld [vmem:[#allocation2 + $0x160] sm:$0xff]
    %v560 = vld [vmem:[#allocation2 + $0x168] sm:$0xff]
    %v561 = vld [vmem:[#allocation2 + $0x170] sm:$0xff]
    %v562 = vld [vmem:[#allocation2 + $0x178] sm:$0xff]
    %v563 = vld [vmem:[#allocation2 + $0x180] sm:$0xff]
    %v564 = vld [vmem:[#allocation2 + $0x188] sm:$0xff]
    %v565 = vld [vmem:[#allocation2 + $0x190] sm:$0xff]
    %v566 = vld [vmem:[#allocation2 + $0x198] sm:$0xff]
    %v567 = vld [vmem:[#allocation2 + $0x1a0] sm:$0xff]
    %v568 = vlaneseq
    %v569 = vshrl.u32 %v568, 7
    %v570 = vsub.s32 3, %v569
    %v571 = vrot.slane %v53, %v570
    %572 = vmatprep.subr.mxu0 0.0
    %573 = vmatpush1.msra.mxu0 %v552
    %574 = vmatprep.subr.mxu0 0.0
    %575 = vmatpush1.msra.mxu0 %v553
    %576 = vmatprep.subr.mxu0 0.0
    %577 = vmatpush1.msra.mxu0 %v554
    %578 = vmatprep.subr.mxu0 0.0
    %579 = vmatpush1.msra.mxu0 %v555
    %580 = vmatprep.subr.mxu0 0.0
    %581 = vmatpush1.msra.mxu0 %v556
    %582 = vmatprep.subr.mxu0 0.0
    %583 = vmatpush1.msra.mxu0 %v557
    %584 = vmatprep.subr.mxu0 0.0
    %585 = vmatpush1.msra.mxu0 %v558
    %586 = vmatprep.subr.mxu0 0.0
    %587 = vmatpush1.msra.mxu0 %v559
    %588 = vmatprep.subr.mxu0 0.0
    %589 = vmatpush1.msra.mxu0 %v560
    %590 = vmatprep.subr.mxu0 0.0
    %591 = vmatpush1.msra.mxu0 %v561
    %592 = vmatprep.subr.mxu0 0.0
    %593 = vmatpush1.msra.mxu0 %v562
    %594 = vmatprep.subr.mxu0 0.0
    %595 = vmatpush1.msra.mxu0 %v563
    %596 = vmatprep.subr.mxu0 0.0
    %597 = vmatpush1.msra.mxu0 %v564
    %598 = vmatprep.subr.mxu0 0.0
    %599 = vmatpush1.msra.mxu0 %v565
    %600 = vmatprep.subr.mxu0 0.0
    %601 = vmatpush1.msra.mxu0 %v566
    %602 = vmatprep.subr.mxu0 0.0
    %603 = vmatpush1.msra.mxu0 %v567
    %604 = vmatprep.subr.mxu0 0.0
    %605 = vmatpush1.msra.mxu0 0.0
    %606 = vmatprep.subr.mxu0 0.0
    %607 = vmatpush1.msra.mxu0 0.0
    %608 = vmatprep.subr.mxu0 0.0
    %609 = vmatpush1.msra.mxu0 0.0
    %610 = vmatprep.subr.mxu0 0.0
    %611 = vmatpush1.msra.mxu0 0.0
    %612 = vmatprep.subr.mxu0 0.0
    %613 = vmatpush1.msra.mxu0 0.0
    %614 = vmatprep.subr.mxu0 0.0
    %615 = vmatpush1.msra.mxu0 0.0
    %616 = vmatprep.subr.mxu0 0.0
    %617 = vmatpush1.msra.mxu0 0.0
    %618 = vmatprep.subr.mxu0 0.0
    %619 = vmatpush1.msra.mxu0 0.0
    %620 = vmatprep.subr.mxu0 0.0
    %621 = vmatpush1.msra.mxu0 0.0
    %622 = vmatprep.subr.mxu0 0.0
    %623 = vmatpush1.msra.mxu0 0.0
    %624 = vmatprep.subr.mxu0 0.0
    %625 = vmatpush1.msra.mxu0 0.0
    %626 = vmatprep.subr.mxu0 0.0
    %627 = vmatpush1.msra.mxu0 0.0
    %628 = vmatprep.subr.mxu0 0.0
    %629 = vmatpush1.msra.mxu0 0.0
    %630 = vmatprep.subr.mxu0 0.0
    %631 = vmatpush1.msra.mxu0 0.0
    %632 = vmatprep.subr.mxu0 0.0
    %633 = vmatpush1.msra.mxu0 0.0
    %634 = vmatprep.subr.mxu0 0.0
    %635 = vmatpush1.msra.mxu0 0.0
    %636 = vmatprep.mubr.f32.mxu0 0.0
    %637 = vmatmul.mubr.f32.gmra.mrb[0].mxu0 %v551
    %v638 = vpop.f32.mrb[0].mxu0
    %v639 = vadd.f32 %v571, %v638
    %v640 = vpop.f32.mrb[0].mxu0
    %641 = vdwg.mxu0
    %vm642 = vcmp.gt.f32.partialorder %v639, 0.0
    %v643 = vmul.f32 %v639, 0.01
    %v644 = vsel %vm642, %v639, %v643
    %v645 = vlaneseq
    %v646 = vshrl.u32 %v645, 7
    %v647 = vsub.s32 4, %v646
    %v648 = vrot.slane %v53, %v647
    %v649 = vmul.f32 %v644, %v648
    %650 = vadd.xlane.f32.xlu0 %v649
    %v651 = vpop.xlane.xlu0 %650
    %v652 = vlaneseq
    %v653 = vshrl.u32 %v652, 7
    %v654 = vsub.s32 5, %v653
    %v655 = vrot.slane %v53, %v654
    %v656 = vadd.f32 %v651, %v655
    %657 = vst [vmem:[%s3] sm:$0xff] %v656
    // Predicated region
    $region18: #{forward.1} parent=1 // pred_check
      _
    $region19: #{forward.1} parent=1 // pred_check_branch
      %659 = sbr.rel (0) target = $region21
    $region20: #{forward.1} parent=1 // pred_region
      _
    $region21: #{forward.1} parent=1 // pred_fallthru
      _
    // Predicated region
    $region22: #{forward.1} parent=1 // pred_check
      _
    $region23: #{forward.1} parent=1 // pred_check_branch
      %661 = sbr.rel (0) target = $region25
    $region24: #{forward.1} parent=1 // pred_region
      _
    $region25: #{forward.1} parent=1 // pred_fallthru
      _
    %662 = vsyncpa [#allocation3], 1

</llo_original>
